<compile_context>
chip_gen: v5e
topology: v5e:2x2
jax: 0.10.0
libtpu: 0.0.40
codegen_flags: <defaults>
</compile_context>

<pallas_src>
import jax
import jax.numpy as jnp
from jax.experimental import pallas as pl
from jax.experimental.pallas import tpu as pltpu

LANE = 128     # TPU lane width: packed weight columns are zero-padded to this.
SUBLANE = 8    # f32 sublane granularity; every packed block starts 8-aligned.


def _round_up(n, m):
    return (n + m - 1) // m * m


# -----------------------------------------------------------------------------
# Parameter packing: one contiguous f32 (rows, 128) slab -> a single HBM->VMEM
# DMA.  Each block keeps only its real rows (rounded up to 8 sublanes); columns
# are zero-padded to 128 so every matmul output is a full-lane MXU tile (the
# zero columns contribute exactly 0 and are sliced away before the next dot).
# -----------------------------------------------------------------------------
def pack_params(params):
    blocks, offsets, cur = [], {}, 0

    def add(name, a):
        nonlocal cur
        r, c = a.shape
        assert c <= LANE, f"{name}: out_features {c} > {LANE} not supported"
        rp = _round_up(r, SUBLANE)
        blocks.append(jnp.pad(a.astype(jnp.float32), ((0, rp - r), (0, LANE - c))))
        offsets[name] = cur
        cur += rp

    for name in ("w1", "b1", "w2", "b2", "w3", "b3"):
        add(name, params[name])
    slab = jnp.concatenate(blocks, axis=0)        # (rows, 128) f32
    return slab, offsets


def _make_kernel(in_size, hidden, hidden2, out_size, offsets, mxu_dtype):
    o_w1, o_b1 = offsets["w1"], offsets["b1"]
    o_w2, o_b2 = offsets["w2"], offsets["b2"]
    o_w3, o_b3 = offsets["w3"], offsets["b3"]
    f32 = jnp.float32

    def kernel(params_ref, x_ref, out_ref):
        # x arrives in its HBM dtype; any MXU-dtype cast is done here (VPU
        # filler under the HBM bound) instead of a separate wrapper-side pass.
        x = x_ref[...].astype(mxu_dtype)                      # (TB, I)

        # Static, sublane-aligned slices of the single packed f32 slab.
        # Only weights are cast for the MXU; biases stay f32.
        w1 = params_ref[o_w1:o_w1 + in_size, :].astype(mxu_dtype)   # (I, 128)
        b1 = params_ref[o_b1:o_b1 + 1, :]                            # (1, 128)
        w2 = params_ref[o_w2:o_w2 + hidden, :].astype(mxu_dtype)    # (H, 128)
        b2 = params_ref[o_b2:o_b2 + 1, :]
        w3 = params_ref[o_w3:o_w3 + hidden2, :].astype(mxu_dtype)   # (H/2, 128)
        b3 = params_ref[o_b3:o_b3 + 1, :]

        # fc1 + ReLU (MXU in mxu_dtype, accumulate/elementwise in f32)
        h = jnp.dot(x, w1, preferred_element_type=f32) + b1          # (TB, 128)
        h = jnp.maximum(h, 0.0)
        # fc2 + ReLU — contract only the real K=hidden lanes (no 128-pad).
        h = jnp.dot(h[:, :hidden].astype(mxu_dtype), w2,
                    preferred_element_type=f32) + b2
        h = jnp.maximum(h, 0.0)
        # fc3 + exact sigmoid (exp on EUP; the divide is free under HBM bound).
        h = jnp.dot(h[:, :hidden2].astype(mxu_dtype), w3,
                    preferred_element_type=f32) + b3
        h = 1.0 / (1.0 + jnp.exp(-h))
        # Store only the real output lanes: block last dim == full array dim,
        # so the writeback DMA is contiguous and moves no padding bytes.
        out_ref[...] = h[:, :out_size]                               # (TB, O)

    return kernel


def classifier_forward(x, slab, offsets, hidden_size, output_size, *,
                       tile_b=1024, mxu_dtype=jnp.float32):
    """x: (B, input_size) in its natural dtype.  slab/offsets: from pack_params.
    Returns (B, output_size) float32."""
    B, in_size = x.shape
    hidden2 = hidden_size // 2
    assert hidden_size <= LANE and hidden2 <= LANE and output_size <= LANE, \
        "this kernel keeps every layer's out_features within one 128-lane tile"
    # TODO(synk): hidden/output sizes > 128 would need a column-tiled variant.

    # Batch tile: multiple of the sublane packing of x's dtype, big enough to
    # amortize the ~0.35us per-grid-step overhead, but capped near ceil(B/2) so
    # the grid has >=2 steps for v7x's two TensorCores.  No XLA-side pad of x:
    # the ragged last tile is handled by Pallas (garbage rows are clipped on
    # the output writeback).
    sub = max(SUBLANE, 32 // jnp.dtype(x.dtype).itemsize)
    tb = max(sub, min(_round_up(tile_b, sub), _round_up(pl.cdiv(B, 2), sub)))
    nb = pl.cdiv(B, tb)

    kernel = _make_kernel(in_size, hidden_size, hidden2, output_size,
                          offsets, mxu_dtype)

    out = pl.pallas_call(
        kernel,
        out_shape=jax.ShapeDtypeStruct((B, output_size), jnp.float32),
        grid_spec=pltpu.PrefetchScalarGridSpec(
            num_scalar_prefetch=0,
            grid=(nb,),
            in_specs=[
                # Packed params: constant index_map -> single DMA, stays
                # VMEM-resident for every batch tile (~tens of KiB).
                pl.BlockSpec(slab.shape, lambda i: (0, 0)),
                # x: one batch tile per grid step (auto double-buffered),
                # DMA'd in its source dtype.
                pl.BlockSpec((tb, in_size), lambda i: (i, 0)),
            ],
            # Output block last dim == full array dim: contiguous, pad-free
            # HBM writeback of only the real O columns.
            out_specs=pl.BlockSpec((tb, output_size), lambda i: (i, 0)),
        ),
        compiler_params=pltpu.CompilerParams(
            # Independent batch tiles: megacore-shardable (2 TCs on v7x).
            dimension_semantics=("parallel",),
        ),
    )(slab, x)
    return out


def init_params(key, input_size, hidden_size, output_size):
    """Deterministic synthetic init (PyTorch-style uniform fan-in bound)."""
    ks = jax.random.split(key, 6)

    def linear(kw, kb, fan_in, fan_out):
        bound = 1.0 / jnp.sqrt(jnp.float32(fan_in))
        w = jax.random.uniform(kw, (fan_in, fan_out), jnp.float32,
                               minval=-bound, maxval=bound)  # stored transposed
        b = jax.random.uniform(kb, (1, fan_out), jnp.float32,
                               minval=-bound, maxval=bound)
        return w, b

    w1, b1 = linear(ks[0], ks[1], input_size, hidden_size)
    w2, b2 = linear(ks[2], ks[3], hidden_size, hidden_size // 2)
    w3, b3 = linear(ks[4], ks[5], hidden_size // 2, output_size)
    return {"w1": w1, "b1": b1, "w2": w2, "b2": b2, "w3": w3, "b3": b3}


def _reference_forward(x, p):
    hp = jax.lax.Precision.HIGHEST
    h = jnp.maximum(jnp.dot(x, p["w1"], precision=hp) + p["b1"], 0.0)
    h = jnp.maximum(jnp.dot(h, p["w2"], precision=hp) + p["b2"], 0.0)
    return jax.nn.sigmoid(jnp.dot(h, p["w3"], precision=hp) + p["b3"])


if __name__ == "__main__":
    key = jax.random.PRNGKey(0)
    k_x, k_x2, k_p = jax.random.split(key, 3)

    input_size = 32
    hidden_size = 32          # hidden // 2 = 16
    output_size = 4

    params = init_params(k_p, input_size, hidden_size, output_size)
    slab, offs = pack_params(params)

    # --- f32 path, small batch -------------------------------------------
    batch = 8
    x = jax.random.normal(k_x, (batch, input_size), jnp.float32)
    ref = _reference_forward(x, params)
    out = classifier_forward(x, slab, offs, hidden_size, output_size)
    out = jax.block_until_ready(out)
    assert out.shape == (batch, output_size)
    assert jnp.allclose(out, ref, atol=2e-3, rtol=2e-3), \
        float(jnp.max(jnp.abs(out - ref)))

    # --- f32 path, awkward batch (multi-step grid + ragged last tile) -----
    batch2 = 37
    x2 = jax.random.normal(k_x2, (batch2, input_size), jnp.float32)
    ref2 = _reference_forward(x2, params)
    out2 = classifier_forward(x2, slab, offs, hidden_size, output_size)
    out2 = jax.block_until_ready(out2)
    assert out2.shape == (batch2, output_size)
    assert jnp.allclose(out2, ref2, atol=2e-3, rtol=2e-3), \
        float(jnp.max(jnp.abs(out2 - ref2)))

    # --- bf16 MXU path: cast happens in-kernel, biases/slab stay f32 ------
    out16 = classifier_forward(x, slab, offs, hidden_size, output_size,
                               mxu_dtype=jnp.bfloat16)
    out16 = jax.block_until_ready(out16)
    assert out16.shape == (batch, output_size)
    assert jnp.allclose(out16, ref, atol=5e-2, rtol=5e-2), \
        float(jnp.max(jnp.abs(out16 - ref)))

    print("KERNEL_OK")
</pallas_src>

<mosaic_0001>
module attributes {stable_mosaic.version = 11 : i64} {
  func.func @kernel(%arg0: i32, %arg1: memref<104x128xf32, #tpu.memory_space<vmem>>, %arg2: memref<8x32xf32, #tpu.memory_space<vmem>>, %arg3: memref<8x4xf32, #tpu.memory_space<vmem>>) attributes {dimension_semantics = [#tpu.dimension_semantics<parallel>], iteration_bounds = array<i64: 1>, scalar_prefetch = 0 : i64, scratch_operands = 0 : i64, tpu.core_type = #tpu.core_type<tc>, window_params = [{pipeline_mode = #tpu.pipeline_mode<synchronous>, transform_indices = @transform_0, window_bounds = array<i64: 104, 128>}, {transform_indices = @transform_1, window_bounds = array<i64: 8, 32>}, {transform_indices = @transform_2, window_bounds = array<i64: 8, 4>}]} {
    %c0 = arith.constant 0 : index
    %c0_0 = arith.constant 0 : index
    %0 = vector.load %arg2[%c0, %c0_0] : memref<8x32xf32, #tpu.memory_space<vmem>>, vector<8x32xf32>
    %c0_1 = arith.constant 0 : index
    %c0_2 = arith.constant 0 : index
    %1 = vector.load %arg1[%c0_1, %c0_2] : memref<104x128xf32, #tpu.memory_space<vmem>>, vector<32x128xf32>
    %c32 = arith.constant 32 : index
    %c0_3 = arith.constant 0 : index
    %2 = vector.load %arg1[%c32, %c0_3] : memref<104x128xf32, #tpu.memory_space<vmem>>, vector<1x128xf32>
    %c40 = arith.constant 40 : index
    %c0_4 = arith.constant 0 : index
    %3 = vector.load %arg1[%c40, %c0_4] : memref<104x128xf32, #tpu.memory_space<vmem>>, vector<32x128xf32>
    %c72 = arith.constant 72 : index
    %c0_5 = arith.constant 0 : index
    %4 = vector.load %arg1[%c72, %c0_5] : memref<104x128xf32, #tpu.memory_space<vmem>>, vector<1x128xf32>
    %c80 = arith.constant 80 : index
    %c0_6 = arith.constant 0 : index
    %5 = vector.load %arg1[%c80, %c0_6] : memref<104x128xf32, #tpu.memory_space<vmem>>, vector<16x128xf32>
    %c96 = arith.constant 96 : index
    %c0_7 = arith.constant 0 : index
    %6 = vector.load %arg1[%c96, %c0_7] : memref<104x128xf32, #tpu.memory_space<vmem>>, vector<1x128xf32>
    %cst = arith.constant dense<0.000000e+00> : vector<8x128xf32>
    %7 = tpu.matmul %0, %1, %cst {dimension_numbers = #tpu.dot_dimension_numbers<[1], [0], [0], [1], [0, 0, 1, 1], [], []>} : vector<8x32xf32>, vector<32x128xf32>, vector<8x128xf32> -> vector<8x128xf32>
    %8 = vector.broadcast %2 : vector<1x128xf32> to vector<8x128xf32>
    %9 = arith.addf %7, %8 : vector<8x128xf32>
    %cst_8 = arith.constant 0.000000e+00 : f32
    %10 = vector.broadcast %cst_8 : f32 to vector<8x128xf32>
    %11 = arith.maximumf %9, %10 : vector<8x128xf32>
    %12 = vector.extract_strided_slice %11 {offsets = [0, 0], sizes = [8, 32], strides = [1, 1]} : vector<8x128xf32> to vector<8x32xf32>
    %cst_9 = arith.constant dense<0.000000e+00> : vector<8x128xf32>
    %13 = tpu.matmul %12, %3, %cst_9 {dimension_numbers = #tpu.dot_dimension_numbers<[1], [0], [0], [1], [0, 0, 1, 1], [], []>} : vector<8x32xf32>, vector<32x128xf32>, vector<8x128xf32> -> vector<8x128xf32>
    %14 = vector.broadcast %4 : vector<1x128xf32> to vector<8x128xf32>
    %15 = arith.addf %13, %14 : vector<8x128xf32>
    %cst_10 = arith.constant 0.000000e+00 : f32
    %16 = vector.broadcast %cst_10 : f32 to vector<8x128xf32>
    %17 = arith.maximumf %15, %16 : vector<8x128xf32>
    %18 = vector.extract_strided_slice %17 {offsets = [0, 0], sizes = [8, 16], strides = [1, 1]} : vector<8x128xf32> to vector<8x16xf32>
    %cst_11 = arith.constant dense<0.000000e+00> : vector<8x128xf32>
    %19 = tpu.matmul %18, %5, %cst_11 {dimension_numbers = #tpu.dot_dimension_numbers<[1], [0], [0], [1], [0, 0, 1, 1], [], []>} : vector<8x16xf32>, vector<16x128xf32>, vector<8x128xf32> -> vector<8x128xf32>
    %20 = vector.broadcast %6 : vector<1x128xf32> to vector<8x128xf32>
    %21 = arith.addf %19, %20 : vector<8x128xf32>
    %cst_12 = arith.constant 0.000000e+00 : f32
    %22 = vector.broadcast %cst_12 : f32 to vector<8x128xf32>
    %23 = arith.subf %22, %21 : vector<8x128xf32>
    %24 = math.exp %23 : vector<8x128xf32>
    %cst_13 = arith.constant 1.000000e+00 : f32
    %25 = vector.broadcast %cst_13 : f32 to vector<8x128xf32>
    %26 = arith.addf %25, %24 : vector<8x128xf32>
    %cst_14 = arith.constant 1.000000e+00 : f32
    %27 = vector.broadcast %cst_14 : f32 to vector<8x128xf32>
    %28 = arith.divf %27, %26 : vector<8x128xf32>
    %29 = vector.extract_strided_slice %28 {offsets = [0, 0], sizes = [8, 4], strides = [1, 1]} : vector<8x128xf32> to vector<8x4xf32>
    %c0_15 = arith.constant 0 : index
    %c0_16 = arith.constant 0 : index
    %30 = vector.load %arg3[%c0_15, %c0_16] : memref<8x4xf32, #tpu.memory_space<vmem>>, vector<8x4xf32>
    tpu.vector_store %arg3[%c0_15, %c0_16], %29 {strides = array<i32>} : memref<8x4xf32, #tpu.memory_space<vmem>>, vector<8x4xf32>,
    return
  }
  func.func @transform_0(%arg0: i32) -> (i32, i32) {
    %c0_i32 = arith.constant 0 : i32
    %c0_i32_0 = arith.constant 0 : i32
    %c0_i32_1 = arith.constant 0 : i32
    return %c0_i32, %c0_i32_0 : i32, i32
  }
  func.func @transform_1(%arg0: i32) -> (i32, i32) {
    %c0_i32 = arith.constant 0 : i32
    %c0_i32_0 = arith.constant 0 : i32
    return %arg0, %c0_i32 : i32, i32
  }
  func.func @transform_2(%arg0: i32) -> (i32, i32) {
    %c0_i32 = arith.constant 0 : i32
    %c0_i32_0 = arith.constant 0 : i32
    return %arg0, %c0_i32 : i32, i32
  }
}

</mosaic_0001>

<llo_original>
// kernel: tpu_custom_call.1
$region0: #{tpu_custom_call.1}
  #allocation0 [shape = 'u32[]', space=smem, size = 0x4, offset = 0x4, fixed_abs, tag = 'smem constant byte address 0x4 - core index']
  #allocation1 [shape = 'u32[72,128]{1,0:T(1,128)}', space=vmem, size = 0x9000, scoped, tag = 'internal scratch']
  %s0 = inlined_call_operand.hbm [shape: f32[104,128], index: 0, kind: input, shape index: {}]
  %s1 = inlined_call_operand.hbm [shape: f32[8,32], index: 1, kind: input, shape index: {}]
  %s2 = inlined_call_operand.vmem [shape: f32[8,4], index: 2, kind: output, shape index: {}]
  %s3 = sld [smem:[#allocation0]]
  $region26: #{tpu_custom_call.1} parent=0
    _
  %s5 = ssub.s32 1, %s3
  %s6 = scalar_select 0, %s5, %s3
  $region1: #{tpu_custom_call.1} parent=0
    #allocation2 [shape = 'u8[53248]{0}', space=vmem, size = 0xd000, scoped, tag = 'input window, operand 0, single buffered']
    #allocation3 [shape = 's32[1]{0}', space=sflag, size = 0x4, scoped, tag = 'scoped memory for tpu_custom_call.1']
    #allocation4 [shape = 'u8[4096]{0}', space=vmem, size = 0x1000, scoped, tag = 'input window, operand 1, single buffered']
    #allocation5 [shape = 's32[1]{0}', space=sflag, size = 0x4, scoped, tag = 'scoped memory for tpu_custom_call.1']
    %7 = vsyncpa [#allocation3], 0
    %8 = vsyncpa [#allocation5], 0
    // Predicated region
    $region2: #{tpu_custom_call.1} parent=1 // pred_check
      _
    $region3: #{tpu_custom_call.1} parent=1 // pred_check_branch
      %10 = sbr.rel (0) target = $region5
    $region4: #{tpu_custom_call.1} parent=1 // pred_region
      %12 = vsyncadd [#allocation3], 0
      %s13 = sshll.u32 %s0, 4
      %s14 = int_to_ptr.hbm [resolvable:$true] %s13
      %s15 = sshll.u32 [#allocation2], 4
      %s16 = int_to_ptr.vmem [resolvable:$true] %s15
      %21 = dma.hbm_to_vmem [thread:$0]  %s14, 1664, %s16, [#allocation3], 128, 128, 8
    $region5: #{tpu_custom_call.1} parent=1 // pred_fallthru
      _
    // Predicated region
    $region6: #{tpu_custom_call.1} parent=1 // pred_check
      _
    $region7: #{tpu_custom_call.1} parent=1 // pred_check_branch
      %23 = sbr.rel (0) target = $region9
    $region8: #{tpu_custom_call.1} parent=1 // pred_region
      %25 = vsyncadd [#allocation5], 0
      %s27 = sshll.u32 %s1, 4
      %s28 = int_to_ptr.hbm [resolvable:$true] %s27
      %s29 = sshll.u32 [#allocation4], 4
      %s30 = int_to_ptr.vmem [resolvable:$true] %s29
      %32 = dma.hbm_to_vmem [thread:$0]  %s28, 128, %s30, [#allocation5]
    $region9: #{tpu_custom_call.1} parent=1 // pred_fallthru
      _
    // Predicated region
    $region10: #{tpu_custom_call.1} parent=1 // pred_check
      _
    $region11: #{tpu_custom_call.1} parent=1 // pred_check_branch
      %34 = sbr.rel (0) target = $region13
    $region12: #{tpu_custom_call.1} parent=1 // pred_region
      %36 = dma.done [#allocation3], 1664
    $region13: #{tpu_custom_call.1} parent=1 // pred_fallthru
      _
    // Predicated region
    $region14: #{tpu_custom_call.1} parent=1 // pred_check
      _
    $region15: #{tpu_custom_call.1} parent=1 // pred_check_branch
      %38 = sbr.rel (0) target = $region17
    $region16: #{tpu_custom_call.1} parent=1 // pred_region
      %40 = dma.done [#allocation5], 128
    $region17: #{tpu_custom_call.1} parent=1 // pred_fallthru
      _
    %v41 = vld [vmem:[#allocation4] sm:$0xff]
    %v42 = vld [vmem:[#allocation2] sm:$0xff]
    %v43 = vld [vmem:[#allocation2 + $0x8] sm:$0xff]
    %v44 = vld [vmem:[#allocation2 + $0x10] sm:$0xff]
    %v45 = vld [vmem:[#allocation2 + $0x18] sm:$0xff]
    %v46 = vld [vmem:[#allocation2 + $0x20] sm:$0x1]
    %v47 = vld [vmem:[#allocation2 + $0x28] sm:$0xff]
    %v48 = vld [vmem:[#allocation2 + $0x30] sm:$0xff]
    %v49 = vld [vmem:[#allocation2 + $0x38] sm:$0xff]
    %v50 = vld [vmem:[#allocation2 + $0x40] sm:$0xff]
    %v51 = vld [vmem:[#allocation2 + $0x48] sm:$0x1]
    %v52 = vld [vmem:[#allocation2 + $0x50] sm:$0xff]
    %v53 = vld [vmem:[#allocation2 + $0x58] sm:$0xff]
    %v54 = vld [vmem:[#allocation2 + $0x60] sm:$0x1]
    %v55 = vperm.slane %v46, 0
    %vm56 = vcmask 261120
    %v58 = vsel %vm56, %v41, 0
    %60 = vmatpush.msra.mxu0 0.0
    %61 = vmatpush.msra.mxu0 0.0
    %62 = vmatpush.msra.mxu0 0.0
    %63 = vmatpush.msra.mxu0 0.0
    %64 = vmatpush.msra.mxu0 0.0
    %65 = vmatpush.msra.mxu0 0.0
    %66 = vmatpush.msra.mxu0 0.0
    %67 = vmatpush.msra.mxu0 0.0
    %68 = vmatpush.msra.mxu0 0.0
    %69 = vmatpush.msra.mxu0 0.0
    %70 = vmatpush.msra.mxu0 0.0
    %71 = vmatpush.msra.mxu0 0.0
    %72 = vmatpush.msra.mxu0 %v45
    %73 = vmatpush.msra.mxu0 %v44
    %74 = vmatpush.msra.mxu0 %v43
    %75 = vmatpush.msra.mxu0 %v42
    %76 = vmatmul.f32.gmra.mxu0 %v58
    %v77 = vpop.f32.mrf.mxu0
    %v78 = vadd.f32 %v55, %v77
    %79 = vdwg.mxu0
    %v80 = vmax.f32 %v78, 0.0
    %v81 = vperm.slane %v51, 0
    %v83 = vsel %vm56, %v80, 0
    %85 = vmatpush.msra.mxu0 0.0
    %86 = vmatpush.msra.mxu0 0.0
    %87 = vmatpush.msra.mxu0 0.0
    %88 = vmatpush.msra.mxu0 0.0
    %89 = vmatpush.msra.mxu0 0.0
    %90 = vmatpush.msra.mxu0 0.0
    %91 = vmatpush.msra.mxu0 0.0
    %92 = vmatpush.msra.mxu0 0.0
    %93 = vmatpush.msra.mxu0 0.0
    %94 = vmatpush.msra.mxu0 0.0
    %95 = vmatpush.msra.mxu0 0.0
    %96 = vmatpush.msra.mxu0 0.0
    %97 = vmatpush.msra.mxu0 %v50
    %98 = vmatpush.msra.mxu0 %v49
    %99 = vmatpush.msra.mxu0 %v48
    %100 = vmatpush.msra.mxu0 %v47
    %101 = vmatmul.f32.gmra.mxu0 %v83
    %v102 = vpop.f32.mrf.mxu0
    %v103 = vadd.f32 %v81, %v102
    %104 = vdwg.mxu0
    %v105 = vmax.f32 %v103, 0.0
    %v106 = vperm.slane %v54, 0
    %vm107 = vcmask 130048
    %v109 = vsel %vm107, %v105, 0
    %111 = vmatpush.msra.mxu0 0.0
    %112 = vmatpush.msra.mxu0 0.0
    %113 = vmatpush.msra.mxu0 0.0
    %114 = vmatpush.msra.mxu0 0.0
    %115 = vmatpush.msra.mxu0 0.0
    %116 = vmatpush.msra.mxu0 0.0
    %117 = vmatpush.msra.mxu0 0.0
    %118 = vmatpush.msra.mxu0 0.0
    %119 = vmatpush.msra.mxu0 0.0
    %120 = vmatpush.msra.mxu0 0.0
    %121 = vmatpush.msra.mxu0 0.0
    %122 = vmatpush.msra.mxu0 0.0
    %123 = vmatpush.msra.mxu0 0.0
    %124 = vmatpush.msra.mxu0 0.0
    %125 = vmatpush.msra.mxu0 %v53
    %126 = vmatpush.msra.mxu0 %v52
    %127 = vmatmul.f32.gmra.mxu0 %v109
    %v128 = vpop.f32.mrf.mxu0
    %v129 = vadd.f32 %v106, %v128
    %130 = vdwg.mxu0
    %v131 = vsub.f32 0.0, %v129
    %v132 = vmul.f32 %v131, 1.442695
    %v133 = vpow.pop %v132
    %v134 = vadd.f32 %v133, 1.0
    %v135 = vrcp.pop %v134
    %v136 = vmul.f32 %v134, %v135
    %v137 = vsub.f32 1.0, %v136
    %v138 = vmul.f32 %v135, %v137
    %v139 = vadd.f32 %v135, %v138
    %vm140 = vweird.f32 %v134
    %vm141 = vweird.f32 %v135
    %vm142 = vmor %vm140, %vm141
    %v143 = vsel %vm142, %v135, %v139
    %v144 = vand.u32 2147483647, %v134
    %vm145 = vcmp.eq.f32.partialorder %v144, 8.507059e+37
    %v146 = vand.u32 %v134, 2147483648
    %v147 = vor.u32 1.1754944e-38, %v146
    %v148 = vsel %vm145, %v147, %v143
    %v149 = vmul.f32 1.0, %v148
    %vm150 = vcmask 31744
    %151 = vst.msk [vmem:[%s2] sm:$0xff] %vm150, %v149
    // Predicated region
    $region18: #{tpu_custom_call.1} parent=1 // pred_check
      _
    $region19: #{tpu_custom_call.1} parent=1 // pred_check_branch
      %153 = sbr.rel (0) target = $region21
    $region20: #{tpu_custom_call.1} parent=1 // pred_region
      _
    $region21: #{tpu_custom_call.1} parent=1 // pred_fallthru
      _
    // Predicated region
    $region22: #{tpu_custom_call.1} parent=1 // pred_check
      _
    $region23: #{tpu_custom_call.1} parent=1 // pred_check_branch
      %155 = sbr.rel (0) target = $region25
    $region24: #{tpu_custom_call.1} parent=1 // pred_region
      _
    $region25: #{tpu_custom_call.1} parent=1 // pred_fallthru
      _
    %156 = vsyncpa [#allocation3], 1
    %157 = vsyncpa [#allocation5], 1

</llo_original>
